<compile_context>
chip_gen: v7x
topology: tpu7x:2x2x1
jax: 0.10.0
libtpu: 0.0.40
codegen_flags: <defaults>
</compile_context>

<pallas_src>
import functools

import jax
import jax.numpy as jnp
from jax.experimental import pallas as pl
from jax.experimental.pallas import tpu as pltpu

HEAD_PAD = 128  # lane-dense fused-head width: [mu cols | sigma col | zero pad]


def _policy_kernel(x_ref, w1_ref, b1_ref, w2_ref, b2_ref, wh_ref, bh_ref,
                   out_ref, *, num_means):
    x = x_ref[...]

    # Layer 1: Linear + ReLU
    h1 = jnp.dot(x, w1_ref[...], preferred_element_type=jnp.float32) + b1_ref[...]
    h1 = jnp.maximum(h1, 0.0)

    # Layer 2: Linear + ReLU
    h2 = jnp.dot(h1, w2_ref[...], preferred_element_type=jnp.float32) + b2_ref[...]
    h2 = jnp.maximum(h2, 0.0)

    # Fused heads: ONE MXU matmul producing a lane-dense (tb, 128) block:
    #   cols [0, num_means)  -> mu
    #   col   num_means      -> pre-softplus variance logit
    #   cols  > num_means    -> exact zeros (zero-padded weights/bias)
    heads = jnp.dot(h2, wh_ref[...], preferred_element_type=jnp.float32) + bh_ref[...]

    # sigma = sqrt(softplus(v)). Computed on the full block (exp/log/sqrt ride the
    # otherwise-idle EUP slot) and merged in with a lane select — no tiny-column ops.
    sigma_full = jnp.sqrt(jnp.logaddexp(heads, 0.0))
    lane = jax.lax.broadcasted_iota(jnp.int32, heads.shape, 1)
    out_ref[...] = jnp.where(lane == num_means, sigma_full, heads).astype(out_ref.dtype)


def prepare_params(torch_params, num_means):
    """One-time conversion from PyTorch (out, in) layout to kernel layout.

    Do this at init, NOT per forward call: transposes and the fused-head packing
    are amortized to zero.
    """
    w1 = jnp.asarray(torch_params["w1"], jnp.float32).T          # (in, hid)
    w2 = jnp.asarray(torch_params["w2"], jnp.float32).T          # (hid, hid)
    b1 = jnp.asarray(torch_params["b1"], jnp.float32)[None, :]   # (1, hid)
    b2 = jnp.asarray(torch_params["b2"], jnp.float32)[None, :]   # (1, hid)

    hid = w1.shape[1]
    wh = jnp.zeros((hid, HEAD_PAD), jnp.float32)
    wh = wh.at[:, :num_means].set(jnp.asarray(torch_params["wmu"], jnp.float32).T)
    wh = wh.at[:, num_means:num_means + 1].set(
        jnp.asarray(torch_params["wv"], jnp.float32).T)
    bh = jnp.zeros((1, HEAD_PAD), jnp.float32)
    bh = bh.at[:, :num_means].set(jnp.asarray(torch_params["bmu"], jnp.float32)[None, :])
    bh = bh.at[:, num_means:num_means + 1].set(
        jnp.asarray(torch_params["bv"], jnp.float32)[None, :])

    return dict(w1=w1, b1=b1, w2=w2, b2=b2, wh=wh, bh=bh, num_means=num_means)


def policy_network_forward(x, kparams):
    """x: (B, input_size) float32. kparams: output of prepare_params()."""
    num_means = kparams["num_means"]
    B, in_dim = x.shape
    hid = kparams["w1"].shape[1]

    # Row tile: at least 8 sublanes, at most 256 rows per grid step.
    tb = min(256, ((B + 7) // 8) * 8)
    b_pad = ((B + tb - 1) // tb) * tb
    if b_pad != B:
        x = jnp.pad(x, ((0, b_pad - B), (0, 0)))

    grid = (b_pad // tb,)

    # Weights/biases stay VMEM-resident across the whole grid.
    resident = lambda a: pl.BlockSpec(a.shape, lambda i: (0,) * a.ndim)

    kernel = functools.partial(_policy_kernel, num_means=num_means)

    flops = 2 * b_pad * (in_dim * hid + hid * hid + hid * HEAD_PAD)
    bytes_accessed = 4 * (
        b_pad * in_dim
        + kparams["w1"].size + kparams["b1"].size
        + kparams["w2"].size + kparams["b2"].size
        + kparams["wh"].size + kparams["bh"].size
        + b_pad * HEAD_PAD)

    out = pl.pallas_call(
        kernel,
        grid=grid,
        in_specs=[
            pl.BlockSpec((tb, in_dim), lambda i: (i, 0)),   # batch-tiled input
            resident(kparams["w1"]), resident(kparams["b1"]),
            resident(kparams["w2"]), resident(kparams["b2"]),
            resident(kparams["wh"]), resident(kparams["bh"]),
        ],
        out_specs=pl.BlockSpec((tb, HEAD_PAD), lambda i: (i, 0)),
        out_shape=jax.ShapeDtypeStruct((b_pad, HEAD_PAD), jnp.float32),
        compiler_params=pltpu.CompilerParams(dimension_semantics=("parallel",)),
        cost_estimate=pl.CostEstimate(
            flops=flops,
            transcendentals=3 * b_pad * HEAD_PAD,
            bytes_accessed=bytes_accessed),
    )(x, kparams["w1"], kparams["b1"], kparams["w2"], kparams["b2"],
      kparams["wh"], kparams["bh"])

    mu = out[:B, :num_means]
    sigma = out[:B, num_means:num_means + 1]
    return mu, sigma


def init_params(key, input_size, hidden_size, num_means):
    """Deterministic synthetic init (uniform, PyTorch-Linear-like bounds), torch layout."""
    ks = jax.random.split(key, 8)

    def lin(kw, kb, fan_in, fan_out):
        bound = 1.0 / jnp.sqrt(fan_in)
        w = jax.random.uniform(kw, (fan_out, fan_in), jnp.float32, -bound, bound)
        b = jax.random.uniform(kb, (fan_out,), jnp.float32, -bound, bound)
        return w, b

    w1, b1 = lin(ks[0], ks[1], input_size, hidden_size)
    w2, b2 = lin(ks[2], ks[3], hidden_size, hidden_size)
    wmu, bmu = lin(ks[4], ks[5], hidden_size, num_means)
    wv, bv = lin(ks[6], ks[7], hidden_size, 1)
    return dict(w1=w1, b1=b1, w2=w2, b2=b2, wmu=wmu, bmu=bmu, wv=wv, bv=bv)


if __name__ == "__main__":
    # hidden_size2 exists in the reference module's signature but is unused there.
    input_size, hidden_size, hidden_size2, num_means = 4, 32, 32, 3
    batch = 2

    key = jax.random.PRNGKey(0)
    kx, kp = jax.random.split(key)
    x = jax.random.normal(kx, (batch, input_size), jnp.float32)
    torch_params = init_params(kp, input_size, hidden_size, num_means)

    # One-time layout prep (transposes + fused-head packing) — not per call.
    kparams = prepare_params(torch_params, num_means)

    mu, sigma = policy_network_forward(x, kparams)
    jax.block_until_ready((mu, sigma))

    # Pure-JAX reference (same math, torch layout) to validate the kernel.
    h1 = jnp.maximum(x @ torch_params["w1"].T + torch_params["b1"], 0.0)
    h2 = jnp.maximum(h1 @ torch_params["w2"].T + torch_params["b2"], 0.0)
    mu_ref = h2 @ torch_params["wmu"].T + torch_params["bmu"]
    sig_ref = jnp.sqrt(jnp.logaddexp(h2 @ torch_params["wv"].T + torch_params["bv"], 0.0))

    assert mu.shape == (batch, num_means) and sigma.shape == (batch, 1)
    assert jnp.allclose(mu, mu_ref, atol=1e-5), "mu mismatch"
    assert jnp.allclose(sigma, sig_ref, atol=1e-5), "sigma mismatch"

    print("KERNEL_OK")
</pallas_src>

<mosaic_0001>
module attributes {stable_mosaic.version = 11 : i64} {
  func.func @_policy_kernel(%arg0: i32, %arg1: memref<8x4xf32, #tpu.memory_space<vmem>>, %arg2: memref<4x32xf32, #tpu.memory_space<vmem>>, %arg3: memref<1x32xf32, #tpu.memory_space<vmem>>, %arg4: memref<32x32xf32, #tpu.memory_space<vmem>>, %arg5: memref<1x32xf32, #tpu.memory_space<vmem>>, %arg6: memref<32x128xf32, #tpu.memory_space<vmem>>, %arg7: memref<1x128xf32, #tpu.memory_space<vmem>>, %arg8: memref<8x128xf32, #tpu.memory_space<vmem>>) attributes {dimension_semantics = [#tpu.dimension_semantics<parallel>], iteration_bounds = array<i64: 1>, scalar_prefetch = 0 : i64, scratch_operands = 0 : i64, tpu.core_type = #tpu.core_type<tc>, window_params = [{transform_indices = @transform_0, window_bounds = array<i64: 8, 4>}, {pipeline_mode = #tpu.pipeline_mode<synchronous>, transform_indices = @transform_1, window_bounds = array<i64: 4, 32>}, {pipeline_mode = #tpu.pipeline_mode<synchronous>, transform_indices = @transform_2, window_bounds = array<i64: 1, 32>}, {pipeline_mode = #tpu.pipeline_mode<synchronous>, transform_indices = @transform_3, window_bounds = array<i64: 32, 32>}, {pipeline_mode = #tpu.pipeline_mode<synchronous>, transform_indices = @transform_4, window_bounds = array<i64: 1, 32>}, {pipeline_mode = #tpu.pipeline_mode<synchronous>, transform_indices = @transform_5, window_bounds = array<i64: 32, 128>}, {pipeline_mode = #tpu.pipeline_mode<synchronous>, transform_indices = @transform_6, window_bounds = array<i64: 1, 128>}, {transform_indices = @transform_7, window_bounds = array<i64: 8, 128>}]} {
    %c0 = arith.constant 0 : index
    %c0_0 = arith.constant 0 : index
    %0 = vector.load %arg1[%c0, %c0_0] : memref<8x4xf32, #tpu.memory_space<vmem>>, vector<8x4xf32>
    %c0_1 = arith.constant 0 : index
    %c0_2 = arith.constant 0 : index
    %1 = vector.load %arg2[%c0_1, %c0_2] : memref<4x32xf32, #tpu.memory_space<vmem>>, vector<4x32xf32>
    %cst = arith.constant dense<0.000000e+00> : vector<8x32xf32>
    %2 = tpu.matmul %0, %1, %cst {dimension_numbers = #tpu.dot_dimension_numbers<[1], [0], [0], [1], [0, 0, 1, 1], [], []>} : vector<8x4xf32>, vector<4x32xf32>, vector<8x32xf32> -> vector<8x32xf32>
    %c0_3 = arith.constant 0 : index
    %c0_4 = arith.constant 0 : index
    %3 = vector.load %arg3[%c0_3, %c0_4] : memref<1x32xf32, #tpu.memory_space<vmem>>, vector<1x32xf32>
    %4 = vector.broadcast %3 : vector<1x32xf32> to vector<8x32xf32>
    %5 = arith.addf %2, %4 : vector<8x32xf32>
    %cst_5 = arith.constant 0.000000e+00 : f32
    %6 = vector.broadcast %cst_5 : f32 to vector<8x32xf32>
    %7 = arith.maximumf %5, %6 : vector<8x32xf32>
    %c0_6 = arith.constant 0 : index
    %c0_7 = arith.constant 0 : index
    %8 = vector.load %arg4[%c0_6, %c0_7] : memref<32x32xf32, #tpu.memory_space<vmem>>, vector<32x32xf32>
    %cst_8 = arith.constant dense<0.000000e+00> : vector<8x32xf32>
    %9 = tpu.matmul %7, %8, %cst_8 {dimension_numbers = #tpu.dot_dimension_numbers<[1], [0], [0], [1], [0, 0, 1, 1], [], []>} : vector<8x32xf32>, vector<32x32xf32>, vector<8x32xf32> -> vector<8x32xf32>
    %c0_9 = arith.constant 0 : index
    %c0_10 = arith.constant 0 : index
    %10 = vector.load %arg5[%c0_9, %c0_10] : memref<1x32xf32, #tpu.memory_space<vmem>>, vector<1x32xf32>
    %11 = vector.broadcast %10 : vector<1x32xf32> to vector<8x32xf32>
    %12 = arith.addf %9, %11 : vector<8x32xf32>
    %cst_11 = arith.constant 0.000000e+00 : f32
    %13 = vector.broadcast %cst_11 : f32 to vector<8x32xf32>
    %14 = arith.maximumf %12, %13 : vector<8x32xf32>
    %c0_12 = arith.constant 0 : index
    %c0_13 = arith.constant 0 : index
    %15 = vector.load %arg6[%c0_12, %c0_13] : memref<32x128xf32, #tpu.memory_space<vmem>>, vector<32x128xf32>
    %cst_14 = arith.constant dense<0.000000e+00> : vector<8x128xf32>
    %16 = tpu.matmul %14, %15, %cst_14 {dimension_numbers = #tpu.dot_dimension_numbers<[1], [0], [0], [1], [0, 0, 1, 1], [], []>} : vector<8x32xf32>, vector<32x128xf32>, vector<8x128xf32> -> vector<8x128xf32>
    %c0_15 = arith.constant 0 : index
    %c0_16 = arith.constant 0 : index
    %17 = vector.load %arg7[%c0_15, %c0_16] : memref<1x128xf32, #tpu.memory_space<vmem>>, vector<1x128xf32>
    %18 = vector.broadcast %17 : vector<1x128xf32> to vector<8x128xf32>
    %19 = arith.addf %16, %18 : vector<8x128xf32>
    %cst_17 = arith.constant 0.000000e+00 : f32
    %20 = vector.broadcast %cst_17 : f32 to vector<8x128xf32>
    %21 = arith.maximumf %19, %20 : vector<8x128xf32>
    %22 = vector.broadcast %cst_17 : f32 to vector<8x128xf32>
    %23 = arith.subf %19, %22 : vector<8x128xf32>
    %24 = arith.cmpf one, %23, %23 : vector<8x128xf32>
    %25 = vector.broadcast %cst_17 : f32 to vector<8x128xf32>
    %26 = arith.addf %19, %25 : vector<8x128xf32>
    %27 = math.absf %23 : vector<8x128xf32>
    %cst_18 = arith.constant 0.000000e+00 : f32
    %28 = vector.broadcast %cst_18 : f32 to vector<8x128xf32>
    %29 = arith.subf %28, %27 : vector<8x128xf32>
    %30 = math.exp %29 : vector<8x128xf32>
    %31 = math.log1p %30 : vector<8x128xf32>
    %32 = arith.addf %21, %31 : vector<8x128xf32>
    %33 = arith.select %24, %26, %32 : vector<8x128xi1>, vector<8x128xf32>
    %34 = math.sqrt %33 : vector<8x128xf32>
    %35 = tpu.iota {dimensions = array<i32: 1>} : vector<8x128xi32>
    %c3_i32 = arith.constant 3 : i32
    %36 = vector.broadcast %c3_i32 : i32 to vector<8x128xi32>
    %37 = arith.cmpi eq, %35, %36 : vector<8x128xi32>
    %38 = arith.select %37, %34, %19 : vector<8x128xi1>, vector<8x128xf32>
    %c0_19 = arith.constant 0 : index
    %c0_20 = arith.constant 0 : index
    %39 = vector.load %arg8[%c0_19, %c0_20] : memref<8x128xf32, #tpu.memory_space<vmem>>, vector<8x128xf32>
    tpu.vector_store %arg8[%c0_19, %c0_20], %38 {strides = array<i32>} : memref<8x128xf32, #tpu.memory_space<vmem>>, vector<8x128xf32>,
    return
  }
  func.func @transform_0(%arg0: i32) -> (i32, i32) {
    %c0_i32 = arith.constant 0 : i32
    %c0_i32_0 = arith.constant 0 : i32
    return %arg0, %c0_i32 : i32, i32
  }
  func.func @transform_1(%arg0: i32) -> (i32, i32) {
    %c0_i32 = arith.constant 0 : i32
    %c0_i32_0 = arith.constant 0 : i32
    %c0_i32_1 = arith.constant 0 : i32
    return %c0_i32, %c0_i32_0 : i32, i32
  }
  func.func @transform_2(%arg0: i32) -> (i32, i32) {
    %c0_i32 = arith.constant 0 : i32
    %c0_i32_0 = arith.constant 0 : i32
    %c0_i32_1 = arith.constant 0 : i32
    return %c0_i32, %c0_i32_0 : i32, i32
  }
  func.func @transform_3(%arg0: i32) -> (i32, i32) {
    %c0_i32 = arith.constant 0 : i32
    %c0_i32_0 = arith.constant 0 : i32
    %c0_i32_1 = arith.constant 0 : i32
    return %c0_i32, %c0_i32_0 : i32, i32
  }
  func.func @transform_4(%arg0: i32) -> (i32, i32) {
    %c0_i32 = arith.constant 0 : i32
    %c0_i32_0 = arith.constant 0 : i32
    %c0_i32_1 = arith.constant 0 : i32
    return %c0_i32, %c0_i32_0 : i32, i32
  }
  func.func @transform_5(%arg0: i32) -> (i32, i32) {
    %c0_i32 = arith.constant 0 : i32
    %c0_i32_0 = arith.constant 0 : i32
    %c0_i32_1 = arith.constant 0 : i32
    return %c0_i32, %c0_i32_0 : i32, i32
  }
  func.func @transform_6(%arg0: i32) -> (i32, i32) {
    %c0_i32 = arith.constant 0 : i32
    %c0_i32_0 = arith.constant 0 : i32
    %c0_i32_1 = arith.constant 0 : i32
    return %c0_i32, %c0_i32_0 : i32, i32
  }
  func.func @transform_7(%arg0: i32) -> (i32, i32) {
    %c0_i32 = arith.constant 0 : i32
    %c0_i32_0 = arith.constant 0 : i32
    return %arg0, %c0_i32 : i32, i32
  }
}

</mosaic_0001>

<llo_original>
// kernel: tpu_custom_call.1
$region0: #{tpu_custom_call.1}
  #allocation0 [shape = 'u32[]', space=smem, size = 0x4, offset = 0x4, fixed_abs, tag = 'smem constant byte address 0x4 - core index']
  #allocation1 [shape = 'u32[144,128]{1,0:T(1,128)}', space=vmem, size = 0x12000, scoped, tag = 'internal scratch']
  %s0 = inlined_call_operand.vmem [shape: f32[8,4], index: 0, kind: input, shape index: {}]
  %s1 = inlined_call_operand.vmem [shape: f32[4,32], index: 1, kind: input, shape index: {}]
  %s2 = inlined_call_operand.vmem [shape: f32[1,32], index: 2, kind: input, shape index: {}]
  %s3 = inlined_call_operand.hbm [shape: f32[32,32], index: 3, kind: input, shape index: {}]
  %s4 = inlined_call_operand.vmem [shape: f32[1,32], index: 4, kind: input, shape index: {}]
  %s5 = inlined_call_operand.hbm [shape: f32[32,128], index: 5, kind: input, shape index: {}]
  %s6 = inlined_call_operand.vmem [shape: f32[1,128], index: 6, kind: input, shape index: {}]
  %s7 = inlined_call_operand.hbm [shape: f32[8,128], index: 7, kind: output, shape index: {}]
  %s8 = sld [smem:[#allocation0]]
  $region46: #{tpu_custom_call.1} parent=0
    _
  %s10 = ssub.s32 1, %s8
  %s11 = scalar_select 0, %s10, %s8
  $region1: #{tpu_custom_call.1} parent=0
    #allocation2 [shape = 'u8[16384]{0}', space=vmem, size = 0x4000, scoped, tag = 'input window, operand 3, single buffered']
    #allocation3 [shape = 's32[1]{0}', space=sflag, size = 0x4, scoped, tag = 'scoped memory for tpu_custom_call.1']
    #allocation4 [shape = 's32[1]{0}', space=sflag, size = 0x4, scoped, tag = 'scoped memory for tpu_custom_call.1']
    #allocation5 [shape = 'u8[16384]{0}', space=vmem, size = 0x4000, scoped, tag = 'input window, operand 5, single buffered']
    #allocation6 [shape = 's32[1]{0}', space=sflag, size = 0x4, scoped, tag = 'scoped memory for tpu_custom_call.1']
    #allocation7 [shape = 'u8[4096]{0}', space=vmem, size = 0x1000, scoped, tag = 'output window, operand 0, single buffered']
    %12 = vsyncpa [#allocation3], 0
    %13 = vsyncpa [#allocation6], 0
    %14 = vsyncpa [#allocation4], 0
    // Predicated region
    $region2: #{tpu_custom_call.1} parent=1 // pred_check
      _
    $region3: #{tpu_custom_call.1} parent=1 // pred_check_branch
      %16 = sbr.rel (0) target = $region5
    $region4: #{tpu_custom_call.1} parent=1 // pred_region
      _
    $region5: #{tpu_custom_call.1} parent=1 // pred_fallthru
      _
    // Predicated region
    $region6: #{tpu_custom_call.1} parent=1 // pred_check
      _
    $region7: #{tpu_custom_call.1} parent=1 // pred_check_branch
      %18 = sbr.rel (0) target = $region9
    $region8: #{tpu_custom_call.1} parent=1 // pred_region
      _
    $region9: #{tpu_custom_call.1} parent=1 // pred_fallthru
      _
    // Predicated region
    $region10: #{tpu_custom_call.1} parent=1 // pred_check
      _
    $region11: #{tpu_custom_call.1} parent=1 // pred_check_branch
      %20 = sbr.rel (0) target = $region13
    $region12: #{tpu_custom_call.1} parent=1 // pred_region
      _
    $region13: #{tpu_custom_call.1} parent=1 // pred_fallthru
      _
    // Predicated region
    $region14: #{tpu_custom_call.1} parent=1 // pred_check
      _
    $region15: #{tpu_custom_call.1} parent=1 // pred_check_branch
      %22 = sbr.rel (0) target = $region17
    $region16: #{tpu_custom_call.1} parent=1 // pred_region
      %s24 = ssub.s32 512, 512
      %25 = vsyncadd [#allocation3], %s24
      %s26 = sshll.u32 [#allocation2], 4
      %s27 = int_to_ptr.vmem [resolvable:$true] %s26
      %32 = dma.hbm_to_vmem [thread:$0]  %s3, 512, %s27, [#allocation3], 128, 128, 8
    $region17: #{tpu_custom_call.1} parent=1 // pred_fallthru
      _
    // Predicated region
    $region18: #{tpu_custom_call.1} parent=1 // pred_check
      _
    $region19: #{tpu_custom_call.1} parent=1 // pred_check_branch
      %34 = sbr.rel (0) target = $region21
    $region20: #{tpu_custom_call.1} parent=1 // pred_region
      _
    $region21: #{tpu_custom_call.1} parent=1 // pred_fallthru
      _
    // Predicated region
    $region22: #{tpu_custom_call.1} parent=1 // pred_check
      _
    $region23: #{tpu_custom_call.1} parent=1 // pred_check_branch
      %36 = sbr.rel (0) target = $region25
    $region24: #{tpu_custom_call.1} parent=1 // pred_region
      %s38 = ssub.s32 512, 512
      %39 = vsyncadd [#allocation6], %s38
      %s40 = sshll.u32 [#allocation5], 4
      %s41 = int_to_ptr.vmem [resolvable:$true] %s40
      %46 = dma.hbm_to_vmem [thread:$0]  %s5, 512, %s41, [#allocation6], 128, 128, 8
    $region25: #{tpu_custom_call.1} parent=1 // pred_fallthru
      _
    // Predicated region
    $region26: #{tpu_custom_call.1} parent=1 // pred_check
      _
    $region27: #{tpu_custom_call.1} parent=1 // pred_check_branch
      %48 = sbr.rel (0) target = $region29
    $region28: #{tpu_custom_call.1} parent=1 // pred_region
      _
    $region29: #{tpu_custom_call.1} parent=1 // pred_fallthru
      _
    // Predicated region
    $region30: #{tpu_custom_call.1} parent=1 // pred_check
      _
    $region31: #{tpu_custom_call.1} parent=1 // pred_check_branch
      %50 = sbr.rel (0) target = $region33
    $region32: #{tpu_custom_call.1} parent=1 // pred_region
      %51 = dma.done [#allocation3], 512
    $region33: #{tpu_custom_call.1} parent=1 // pred_fallthru
      _
    // Predicated region
    $region34: #{tpu_custom_call.1} parent=1 // pred_check
      _
    $region35: #{tpu_custom_call.1} parent=1 // pred_check_branch
      %53 = sbr.rel (0) target = $region37
    $region36: #{tpu_custom_call.1} parent=1 // pred_region
      %54 = dma.done [#allocation6], 512
    $region37: #{tpu_custom_call.1} parent=1 // pred_fallthru
      _
    %v55 = vld [vmem:[%s0] sm:$0xff]
    %v56 = vld [vmem:[%s1] sm:$0xf]
    %v57 = vld [vmem:[%s2] sm:$0x1]
    %v59 = vlaneseq
    %v60 = vshrl.u32 %v59, 7
    %v61 = vsub.s32 0, %v60
    %v62 = vrot.slane %v57, %v61
    %vm64 = vcmask 31744
    %v66 = vsel %vm64, %v55, 0
    %vm68 = vcmask 1043456
    %v70 = vsel %vm68, %v56, 0
    %72 = vmatprep.subr.mxu0 0.0
    %73 = vmatpush1.msra.mxu0 %v70
    %74 = vmatprep.subr.mxu0 0.0
    %75 = vmatpush1.msra.mxu0 0.0
    %76 = vmatprep.subr.mxu0 0.0
    %77 = vmatpush1.msra.mxu0 0.0
    %78 = vmatprep.subr.mxu0 0.0
    %79 = vmatpush1.msra.mxu0 0.0
    %80 = vmatprep.subr.mxu0 0.0
    %81 = vmatpush1.msra.mxu0 0.0
    %82 = vmatprep.subr.mxu0 0.0
    %83 = vmatpush1.msra.mxu0 0.0
    %84 = vmatprep.subr.mxu0 0.0
    %85 = vmatpush1.msra.mxu0 0.0
    %86 = vmatprep.subr.mxu0 0.0
    %87 = vmatpush1.msra.mxu0 0.0
    %88 = vmatprep.subr.mxu0 0.0
    %89 = vmatpush1.msra.mxu0 0.0
    %90 = vmatprep.subr.mxu0 0.0
    %91 = vmatpush1.msra.mxu0 0.0
    %92 = vmatprep.subr.mxu0 0.0
    %93 = vmatpush1.msra.mxu0 0.0
    %94 = vmatprep.subr.mxu0 0.0
    %95 = vmatpush1.msra.mxu0 0.0
    %96 = vmatprep.subr.mxu0 0.0
    %97 = vmatpush1.msra.mxu0 0.0
    %98 = vmatprep.subr.mxu0 0.0
    %99 = vmatpush1.msra.mxu0 0.0
    %100 = vmatprep.subr.mxu0 0.0
    %101 = vmatpush1.msra.mxu0 0.0
    %102 = vmatprep.subr.mxu0 0.0
    %103 = vmatpush1.msra.mxu0 0.0
    %104 = vmatprep.subr.mxu0 0.0
    %105 = vmatpush1.msra.mxu0 0.0
    %106 = vmatprep.subr.mxu0 0.0
    %107 = vmatpush1.msra.mxu0 0.0
    %108 = vmatprep.subr.mxu0 0.0
    %109 = vmatpush1.msra.mxu0 0.0
    %110 = vmatprep.subr.mxu0 0.0
    %111 = vmatpush1.msra.mxu0 0.0
    %112 = vmatprep.subr.mxu0 0.0
    %113 = vmatpush1.msra.mxu0 0.0
    %114 = vmatprep.subr.mxu0 0.0
    %115 = vmatpush1.msra.mxu0 0.0
    %116 = vmatprep.subr.mxu0 0.0
    %117 = vmatpush1.msra.mxu0 0.0
    %118 = vmatprep.subr.mxu0 0.0
    %119 = vmatpush1.msra.mxu0 0.0
    %120 = vmatprep.subr.mxu0 0.0
    %121 = vmatpush1.msra.mxu0 0.0
    %122 = vmatprep.subr.mxu0 0.0
    %123 = vmatpush1.msra.mxu0 0.0
    %124 = vmatprep.subr.mxu0 0.0
    %125 = vmatpush1.msra.mxu0 0.0
    %126 = vmatprep.subr.mxu0 0.0
    %127 = vmatpush1.msra.mxu0 0.0
    %128 = vmatprep.subr.mxu0 0.0
    %129 = vmatpush1.msra.mxu0 0.0
    %130 = vmatprep.subr.mxu0 0.0
    %131 = vmatpush1.msra.mxu0 0.0
    %132 = vmatprep.subr.mxu0 0.0
    %133 = vmatpush1.msra.mxu0 0.0
    %134 = vmatprep.subr.mxu0 0.0
    %135 = vmatpush1.msra.mxu0 0.0
    %136 = vmatprep.mubr.f32.mxu0 0.0
    %137 = vmatmul.mubr.f32.gmra.mrb[0].mxu0 %v66
    %v138 = vpop.f32.mrb[0].mxu0
    %v139 = vadd.f32 %v62, %v138
    %v140 = vpop.f32.mrb[0].mxu0
    %141 = vdwg.mxu0
    %v142 = vmax.f32 %v139, 0.0
    %v143 = vld [vmem:[#allocation2] sm:$0xff]
    %v144 = vld [vmem:[#allocation2 + $0x8] sm:$0xff]
    %v145 = vld [vmem:[#allocation2 + $0x10] sm:$0xff]
    %v146 = vld [vmem:[#allocation2 + $0x18] sm:$0xff]
    %v147 = vld [vmem:[%s4] sm:$0x1]
    %v149 = vlaneseq
    %v150 = vshrl.u32 %v149, 7
    %v151 = vsub.s32 0, %v150
    %v152 = vrot.slane %v147, %v151
    %vm154 = vcmask 261120
    %v156 = vsel %vm154, %v142, 0
    %158 = vmatprep.subr.mxu0 0.0
    %159 = vmatpush1.msra.mxu0 %v143
    %160 = vmatprep.subr.mxu0 0.0
    %161 = vmatpush1.msra.mxu0 %v144
    %162 = vmatprep.subr.mxu0 0.0
    %163 = vmatpush1.msra.mxu0 %v145
    %164 = vmatprep.subr.mxu0 0.0
    %165 = vmatpush1.msra.mxu0 %v146
    %166 = vmatprep.subr.mxu0 0.0
    %167 = vmatpush1.msra.mxu0 0.0
    %168 = vmatprep.subr.mxu0 0.0
    %169 = vmatpush1.msra.mxu0 0.0
    %170 = vmatprep.subr.mxu0 0.0
    %171 = vmatpush1.msra.mxu0 0.0
    %172 = vmatprep.subr.mxu0 0.0
    %173 = vmatpush1.msra.mxu0 0.0
    %174 = vmatprep.subr.mxu0 0.0
    %175 = vmatpush1.msra.mxu0 0.0
    %176 = vmatprep.subr.mxu0 0.0
    %177 = vmatpush1.msra.mxu0 0.0
    %178 = vmatprep.subr.mxu0 0.0
    %179 = vmatpush1.msra.mxu0 0.0
    %180 = vmatprep.subr.mxu0 0.0
    %181 = vmatpush1.msra.mxu0 0.0
    %182 = vmatprep.subr.mxu0 0.0
    %183 = vmatpush1.msra.mxu0 0.0
    %184 = vmatprep.subr.mxu0 0.0
    %185 = vmatpush1.msra.mxu0 0.0
    %186 = vmatprep.subr.mxu0 0.0
    %187 = vmatpush1.msra.mxu0 0.0
    %188 = vmatprep.subr.mxu0 0.0
    %189 = vmatpush1.msra.mxu0 0.0
    %190 = vmatprep.subr.mxu0 0.0
    %191 = vmatpush1.msra.mxu0 0.0
    %192 = vmatprep.subr.mxu0 0.0
    %193 = vmatpush1.msra.mxu0 0.0
    %194 = vmatprep.subr.mxu0 0.0
    %195 = vmatpush1.msra.mxu0 0.0
    %196 = vmatprep.subr.mxu0 0.0
    %197 = vmatpush1.msra.mxu0 0.0
    %198 = vmatprep.subr.mxu0 0.0
    %199 = vmatpush1.msra.mxu0 0.0
    %200 = vmatprep.subr.mxu0 0.0
    %201 = vmatpush1.msra.mxu0 0.0
    %202 = vmatprep.subr.mxu0 0.0
    %203 = vmatpush1.msra.mxu0 0.0
    %204 = vmatprep.subr.mxu0 0.0
    %205 = vmatpush1.msra.mxu0 0.0
    %206 = vmatprep.subr.mxu0 0.0
    %207 = vmatpush1.msra.mxu0 0.0
    %208 = vmatprep.subr.mxu0 0.0
    %209 = vmatpush1.msra.mxu0 0.0
    %210 = vmatprep.subr.mxu0 0.0
    %211 = vmatpush1.msra.mxu0 0.0
    %212 = vmatprep.subr.mxu0 0.0
    %213 = vmatpush1.msra.mxu0 0.0
    %214 = vmatprep.subr.mxu0 0.0
    %215 = vmatpush1.msra.mxu0 0.0
    %216 = vmatprep.subr.mxu0 0.0
    %217 = vmatpush1.msra.mxu0 0.0
    %218 = vmatprep.subr.mxu0 0.0
    %219 = vmatpush1.msra.mxu0 0.0
    %220 = vmatprep.subr.mxu0 0.0
    %221 = vmatpush1.msra.mxu0 0.0
    %222 = vmatprep.mubr.f32.mxu0 0.0
    %223 = vmatmul.mubr.f32.gmra.mrb[0].mxu0 %v156
    %v224 = vpop.f32.mrb[0].mxu0
    %v225 = vadd.f32 %v152, %v224
    %v226 = vpop.f32.mrb[0].mxu0
    %227 = vdwg.mxu0
    %v228 = vmax.f32 %v225, 0.0
    %v229 = vld [vmem:[#allocation5] sm:$0xff]
    %v230 = vld [vmem:[#allocation5 + $0x8] sm:$0xff]
    %v231 = vld [vmem:[#allocation5 + $0x10] sm:$0xff]
    %v232 = vld [vmem:[#allocation5 + $0x18] sm:$0xff]
    %v233 = vld [vmem:[%s6] sm:$0x1]
    %v235 = vlaneseq
    %v236 = vshrl.u32 %v235, 7
    %v237 = vsub.s32 0, %v236
    %v238 = vrot.slane %v233, %v237
    %v241 = vsel %vm154, %v228, 0
    %243 = vmatprep.subr.mxu0 0.0
    %244 = vmatpush1.msra.mxu0 %v229
    %245 = vmatprep.subr.mxu0 0.0
    %246 = vmatpush1.msra.mxu0 %v230
    %247 = vmatprep.subr.mxu0 0.0
    %248 = vmatpush1.msra.mxu0 %v231
    %249 = vmatprep.subr.mxu0 0.0
    %250 = vmatpush1.msra.mxu0 %v232
    %251 = vmatprep.subr.mxu0 0.0
    %252 = vmatpush1.msra.mxu0 0.0
    %253 = vmatprep.subr.mxu0 0.0
    %254 = vmatpush1.msra.mxu0 0.0
    %255 = vmatprep.subr.mxu0 0.0
    %256 = vmatpush1.msra.mxu0 0.0
    %257 = vmatprep.subr.mxu0 0.0
    %258 = vmatpush1.msra.mxu0 0.0
    %259 = vmatprep.subr.mxu0 0.0
    %260 = vmatpush1.msra.mxu0 0.0
    %261 = vmatprep.subr.mxu0 0.0
    %262 = vmatpush1.msra.mxu0 0.0
    %263 = vmatprep.subr.mxu0 0.0
    %264 = vmatpush1.msra.mxu0 0.0
    %265 = vmatprep.subr.mxu0 0.0
    %266 = vmatpush1.msra.mxu0 0.0
    %267 = vmatprep.subr.mxu0 0.0
    %268 = vmatpush1.msra.mxu0 0.0
    %269 = vmatprep.subr.mxu0 0.0
    %270 = vmatpush1.msra.mxu0 0.0
    %271 = vmatprep.subr.mxu0 0.0
    %272 = vmatpush1.msra.mxu0 0.0
    %273 = vmatprep.subr.mxu0 0.0
    %274 = vmatpush1.msra.mxu0 0.0
    %275 = vmatprep.subr.mxu0 0.0
    %276 = vmatpush1.msra.mxu0 0.0
    %277 = vmatprep.subr.mxu0 0.0
    %278 = vmatpush1.msra.mxu0 0.0
    %279 = vmatprep.subr.mxu0 0.0
    %280 = vmatpush1.msra.mxu0 0.0
    %281 = vmatprep.subr.mxu0 0.0
    %282 = vmatpush1.msra.mxu0 0.0
    %283 = vmatprep.subr.mxu0 0.0
    %284 = vmatpush1.msra.mxu0 0.0
    %285 = vmatprep.subr.mxu0 0.0
    %286 = vmatpush1.msra.mxu0 0.0
    %287 = vmatprep.subr.mxu0 0.0
    %288 = vmatpush1.msra.mxu0 0.0
    %289 = vmatprep.subr.mxu0 0.0
    %290 = vmatpush1.msra.mxu0 0.0
    %291 = vmatprep.subr.mxu0 0.0
    %292 = vmatpush1.msra.mxu0 0.0
    %293 = vmatprep.subr.mxu0 0.0
    %294 = vmatpush1.msra.mxu0 0.0
    %295 = vmatprep.subr.mxu0 0.0
    %296 = vmatpush1.msra.mxu0 0.0
    %297 = vmatprep.subr.mxu0 0.0
    %298 = vmatpush1.msra.mxu0 0.0
    %299 = vmatprep.subr.mxu0 0.0
    %300 = vmatpush1.msra.mxu0 0.0
    %301 = vmatprep.subr.mxu0 0.0
    %302 = vmatpush1.msra.mxu0 0.0
    %303 = vmatprep.subr.mxu0 0.0
    %304 = vmatpush1.msra.mxu0 0.0
    %305 = vmatprep.subr.mxu0 0.0
    %306 = vmatpush1.msra.mxu0 0.0
    %307 = vmatprep.mubr.f32.mxu0 0.0
    %308 = vmatmul.mubr.f32.gmra.mrb[0].mxu0 %v241
    %v309 = vpop.f32.mrb[0].mxu0
    %v310 = vadd.f32 %v238, %v309
    %v311 = vpop.f32.mrb[0].mxu0
    %312 = vdwg.mxu0
    %v313 = vmax.f32 %v310, 0.0
    %vm314 = vcmp.ne.f32.partialorder %v310, %v310
    %v315 = vadd.f32 %v310, 0.0
    %v316 = vand.u32 2147483647, %v310
    %v317 = vsub.f32 0.0, %v316
    %v318 = vmul.f32 %v317, 1.442695
    %v319 = vpow.pop %v318
    %v320 = vadd.f32 %v319, 1.0
    %v321 = vlog2.pop %v320
    %v322 = vmul.f32 %v321, 0.6931472
    %v323 = vmul.f32 -0.5, %v319
    %v324 = vadd.f32 %v323, 1.0
    %v325 = vmul.f32 %v324, %v319
    %v326 = vand.u32 2147483647, %v319
    %vm327 = vcmp.lt.f32.partialorder %v326, 0.0004427343
    %v328 = vsel %vm327, %v325, %v322
    %v329 = vadd.f32 %v313, %v328
    %v330 = vsel %vm314, %v315, %v329
    %v331 = vrsqrt.pop %v330
    %v332 = vmul.f32 %v330, %v331
    %vm333 = vcmp.eq.f32.partialorder %v330, inf
    %v334 = vsel %vm333, %v330, %v332
    %vm335 = vcmp.eq.f32.partialorder %v330, 0.0
    %v336 = vand.u32 %v330, 2147483648
    %v337 = vsel %vm335, %v336, %v334
    %v338 = vlaneseq
    %v339 = vand.u32 %v338, 127
    %vm340 = vcmp.eq.s32.totalorder %v339, 3
    %v341 = vsel %vm340, %v337, %v310
    %342 = vst [vmem:[#allocation7] sm:$0xff] %v341
    // Predicated region
    $region38: #{tpu_custom_call.1} parent=1 // pred_check
      _
    $region39: #{tpu_custom_call.1} parent=1 // pred_check_branch
      %344 = sbr.rel (0) target = $region41
    $region40: #{tpu_custom_call.1} parent=1 // pred_region
      %s346 = ssub.s32 128, 128
      %347 = vsyncadd [#allocation4], %s346
      %s349 = sshll.u32 [#allocation7], 4
      %s350 = int_to_ptr.vmem [resolvable:$true] %s349
      %352 = dma.vmem_to_hbm [thread:$0]  %s350, 128, %s7, [#allocation4]
    $region41: #{tpu_custom_call.1} parent=1 // pred_fallthru
      _
    // Predicated region
    $region42: #{tpu_custom_call.1} parent=1 // pred_check
      _
    $region43: #{tpu_custom_call.1} parent=1 // pred_check_branch
      %354 = sbr.rel (0) target = $region45
    $region44: #{tpu_custom_call.1} parent=1 // pred_region
      %355 = dma.done [#allocation4], 128
    $region45: #{tpu_custom_call.1} parent=1 // pred_fallthru
      _
    %356 = vsyncpa [#allocation3], 1
    %357 = vsyncpa [#allocation6], 1
    %358 = vsyncpa [#allocation4], 1

</llo_original>
